<compile_context>
chip_gen: v7x
topology: tpu7x:2x2x1
jax: 0.10.0
libtpu: 0.0.40
codegen_flags: <defaults>
</compile_context>

<pallas_src>
import jax
import jax.numpy as jnp
from jax.experimental import pallas as pl
from jax.experimental.pallas import tpu as pltpu


# ~12 MiB of input blocks per pipeline buffer (pred + target tiles);
# double-buffered by the BlockSpec pipeline => ~24 MiB, under the 32 MiB cap.
_STEP_INPUT_BUDGET_BYTES = 12 * 1024 * 1024
_VMEM_LIMIT_BYTES = 32 * 1024 * 1024


def _sse_block_kernel(p_ref, t_ref, o_ref):
    """Per-block SSE partial: sum((pred_views - target)^2) over one row tile."""
    p = p_ref[...].astype(jnp.float32)          # (rep, tm, W)
    t = t_ref[...].astype(jnp.float32)          # (tm, W)
    d = p - t[None, :, :]
    # Full reduce to a scalar; XLU work is hidden under the HBM-bound DMA.
    o_ref[...] = jnp.reshape(jnp.sum(d * d), (1, 1))


def _plan_tiles(total, rep, itemsize, max_block_rows=None):
    """Pick (lane_width, padded_rows, row_tile) for a lane-dense (rows, W) view."""
    # Sub-32-bit dtypes pack along sublanes: bf16 -> 16-row tiles, 8-bit -> 32.
    packing = max(1, 4 // max(1, itemsize))
    sub = 8 * packing

    # Lane width: minimal zero padding, tie-break to the widest lane-dense view.
    best = None
    for w in (1024, 512, 256, 128):
        rows_w = -(-total // w)                  # ceil(total / w)
        rows_w = -(-rows_w // sub) * sub         # round rows up to sublane tile
        padded = rows_w * w
        if best is None or padded < best[0]:
            best = (padded, w, rows_w)
    _, width, rows = best

    # Row tile: as big as the per-step budget allows.  Each step DMAs
    # rep pred-rows + 1 target-row per tile row (double-buffered by Pallas).
    cap = _STEP_INPUT_BUDGET_BYTES // ((rep + 1) * width * itemsize)
    cap = max(sub, (cap // sub) * sub)
    if max_block_rows is not None:
        cap = max(sub, min(cap, (max_block_rows // sub) * sub))

    if rows <= cap:
        tm = rows                                # single block
    else:
        # Prefer the largest divisor of rows under the cap (no extra padding);
        # if only degenerate tiny divisors exist, pad rows up instead.
        tm = 0
        d = cap
        while d >= sub:
            if rows % d == 0:
                tm = d
                break
            d -= sub
        if tm < max(sub, cap // 2):
            tm = cap
            rows = -(-rows // tm) * tm
    return width, rows, tm


def _sse_pair(pred, target, *, max_block_rows=None):
    """sum((pred - broadcast(target))**2).

    pred:   (rep*B, N, C) — `rep` views stacked along batch.
    target: (B, N, C)     — read from HBM once, shared by all views in-block.
    """
    assert pred.shape[1:] == target.shape[1:], "trailing dims must match"
    assert pred.shape[0] % target.shape[0] == 0, "recons batch must be a multiple"
    rep = pred.shape[0] // target.shape[0]

    total = int(target.size)
    itemsize = jnp.dtype(pred.dtype).itemsize
    width, rows, tm = _plan_tiles(total, rep, itemsize, max_block_rows)
    padded_total = rows * width
    nblocks = rows // tm

    # Lane-dense views.  When no padding is needed these are free bitcast
    # reshapes (inputs are contiguous row-major); otherwise the zero pad
    # contributes (0-0)^2 = 0 to the SSE.
    p2 = pred.reshape(rep, total)
    t1 = target.reshape(total)
    if padded_total != total:
        p2 = jnp.pad(p2, ((0, 0), (0, padded_total - total)))
        t1 = jnp.pad(t1, (0, padded_total - total))
    p3 = p2.reshape(rep, rows, width)
    t2 = t1.reshape(rows, width)

    partials = pl.pallas_call(
        _sse_block_kernel,
        out_shape=jax.ShapeDtypeStruct((nblocks, 1, 1), jnp.float32),
        grid_spec=pltpu.PrefetchScalarGridSpec(
            num_scalar_prefetch=0,
            grid=(nblocks,),
            in_specs=[
                # recons: all views folded into the block -> target fetched once
                pl.BlockSpec((rep, tm, width), lambda i: (0, i, 0)),
                # target: one row tile, shared by every view in this step
                pl.BlockSpec((tm, width), lambda i: (i, 0)),
            ],
            # one scalar partial per row block (summed outside the kernel)
            out_specs=pl.BlockSpec((None, 1, 1), lambda i: (i, 0, 0)),
        ),
        compiler_params=pltpu.CompilerParams(
            dimension_semantics=("parallel",),
            vmem_limit_bytes=_VMEM_LIMIT_BYTES,
        ),
    )(p3, t2)
    return jnp.sum(partials)


class MultiCAELoss:
    """JAX/Pallas port of the PyTorch MultiCAELoss module (forward only)."""

    def __init__(self, lamb):
        self.lamb = lamb  # (lamb_rgb, lamb_flow) — hyperparameters, no weights

    def __call__(self, output, rgb_target, flow_target):
        rgb_recons, flow_recons = output

        # Two independent launches (no data dependence) so XLA may overlap them.
        rgb_sse = _sse_pair(rgb_recons, rgb_target)
        flow_sse = _sse_pair(flow_recons, flow_target)

        # MSE mean over the broadcasted (recons-sized) tensor.
        mean_rgb_recons_loss = rgb_sse / jnp.float32(rgb_recons.size)
        mean_flow_recons_loss = flow_sse / jnp.float32(flow_recons.size)

        return {
            "sum": self.lamb[0] * mean_rgb_recons_loss
                   + self.lamb[1] * mean_flow_recons_loss,
            "rgb_recons": mean_rgb_recons_loss,
            "flow_recons": mean_flow_recons_loss,
        }


if __name__ == "__main__":
    key = jax.random.PRNGKey(0)
    B, N, C1, C2 = 2, 8, 32, 16

    k1, k2, k3, k4 = jax.random.split(key, 4)
    rgb_recons = jax.random.normal(k1, (2 * B, N, C1), dtype=jnp.float32)
    flow_recons = jax.random.normal(k2, (2 * B, N, C2), dtype=jnp.float32)
    rgb_target = jax.random.normal(k3, (B, N, C1), dtype=jnp.float32)
    flow_target = jax.random.normal(k4, (B, N, C2), dtype=jnp.float32)

    loss_fn = MultiCAELoss(lamb=(1.0, 0.5))
    loss = loss_fn((rgb_recons, flow_recons), rgb_target, flow_target)
    jax.block_until_ready(loss)

    # Pure-JAX reference (target reused for each of the 2 views).
    rgb_ref = jnp.mean((rgb_recons - jnp.tile(rgb_target, (2, 1, 1))) ** 2)
    flow_ref = jnp.mean((flow_recons - jnp.tile(flow_target, (2, 1, 1))) ** 2)
    assert jnp.allclose(loss["rgb_recons"], rgb_ref, rtol=1e-5, atol=1e-6)
    assert jnp.allclose(loss["flow_recons"], flow_ref, rtol=1e-5, atol=1e-6)
    assert jnp.allclose(loss["sum"], 1.0 * rgb_ref + 0.5 * flow_ref,
                        rtol=1e-5, atol=1e-6)

    # Multi-block (row-parallel) path: force tm < rows.
    kp, kt = jax.random.split(k1)
    pred_big = jax.random.normal(kp, (4, 64, 128), dtype=jnp.float32)
    targ_big = jax.random.normal(kt, (2, 64, 128), dtype=jnp.float32)
    sse = _sse_pair(pred_big, targ_big, max_block_rows=8)
    sse_ref = jnp.sum((pred_big - jnp.tile(targ_big, (2, 1, 1))) ** 2)
    assert jnp.allclose(sse, sse_ref, rtol=1e-4, atol=1e-3)

    # Awkward-shape (zero-padded) path.
    ko1, ko2 = jax.random.split(k2)
    pred_odd = jax.random.normal(ko1, (2, 7, 96), dtype=jnp.float32)
    targ_odd = jax.random.normal(ko2, (1, 7, 96), dtype=jnp.float32)
    sse_odd = _sse_pair(pred_odd, targ_odd)
    sse_odd_ref = jnp.sum((pred_odd - jnp.tile(targ_odd, (2, 1, 1))) ** 2)
    assert jnp.allclose(sse_odd, sse_odd_ref, rtol=1e-4, atol=1e-3)

    # bf16 path (packed-sublane row-tile alignment).
    kb1, kb2 = jax.random.split(k3)
    pred_bf = jax.random.normal(kb1, (4, 16, 64), dtype=jnp.bfloat16)
    targ_bf = jax.random.normal(kb2, (2, 16, 64), dtype=jnp.bfloat16)
    sse_bf = _sse_pair(pred_bf, targ_bf)
    sse_bf_ref = jnp.sum((pred_bf.astype(jnp.float32)
                          - jnp.tile(targ_bf.astype(jnp.float32), (2, 1, 1))) ** 2)
    assert jnp.allclose(sse_bf, sse_bf_ref, rtol=1e-4, atol=1e-2)

    print("KERNEL_OK")
</pallas_src>

<mosaic_0001>
module attributes {stable_mosaic.version = 11 : i64} {
  func.func @_sse_block_kernel(%arg0: i32, %arg1: memref<2x8x128xf32, #tpu.memory_space<vmem>>, %arg2: memref<8x128xf32, #tpu.memory_space<vmem>>, %arg3: memref<1x1x1xf32, #tpu.memory_space<vmem>>) attributes {dimension_semantics = [#tpu.dimension_semantics<parallel>], iteration_bounds = array<i64: 1>, scalar_prefetch = 0 : i64, scratch_operands = 0 : i64, tpu.core_type = #tpu.core_type<tc>, window_params = [{transform_indices = @transform_0, window_bounds = array<i64: 2, 8, 128>}, {transform_indices = @transform_1, window_bounds = array<i64: 8, 128>}, {transform_indices = @transform_2, window_bounds = array<i64: 1, 1, 1>}]} {
    %c0 = arith.constant 0 : index
    %c0_0 = arith.constant 0 : index
    %c0_1 = arith.constant 0 : index
    %0 = vector.load %arg1[%c0, %c0_0, %c0_1] : memref<2x8x128xf32, #tpu.memory_space<vmem>>, vector<2x8x128xf32>
    %c0_2 = arith.constant 0 : index
    %c0_3 = arith.constant 0 : index
    %1 = vector.load %arg2[%c0_2, %c0_3] : memref<8x128xf32, #tpu.memory_space<vmem>>, vector<8x128xf32>
    %2 = vector.shape_cast %1 : vector<8x128xf32> to vector<1x8x128xf32>
    %3 = vector.broadcast %2 : vector<1x8x128xf32> to vector<2x8x128xf32>
    %4 = arith.subf %0, %3 : vector<2x8x128xf32>
    %5 = arith.mulf %4, %4 : vector<2x8x128xf32>
    %6 = vector.shape_cast %5 : vector<2x8x128xf32> to vector<1x2x8x128xf32>
    %cst = arith.constant dense<0.000000e+00> : vector<1xf32>
    %7 = vector.multi_reduction <add>, %6, %cst [1, 2, 3] : vector<1x2x8x128xf32> to vector<1xf32>
    %8 = vector.shape_cast %7 : vector<1xf32> to vector<1x1x1x1xf32>
    %9 = vector.extract %8[0, 0, 0, 0] : f32 from vector<1x1x1x1xf32>
    %10 = vector.broadcast %9 : f32 to vector<1x1xf32>
    %c0_4 = arith.constant 0 : index
    %c0_5 = arith.constant 0 : index
    %c0_6 = arith.constant 0 : index
    %11 = vector.load %arg3[%c0_4, %c0_5, %c0_6] : memref<1x1x1xf32, #tpu.memory_space<vmem>>, vector<1x1x1xf32>
    %12 = vector.shape_cast %11 : vector<1x1x1xf32> to vector<1x1xf32>
    %13 = vector.shape_cast %10 : vector<1x1xf32> to vector<1x1x1xf32>
    tpu.vector_store %arg3[%c0_4, %c0_5, %c0_6], %13 {strides = array<i32>} : memref<1x1x1xf32, #tpu.memory_space<vmem>>, vector<1x1x1xf32>,
    return
  }
  func.func @transform_0(%arg0: i32) -> (i32, i32, i32) {
    %c0_i32 = arith.constant 0 : i32
    %c0_i32_0 = arith.constant 0 : i32
    %c0_i32_1 = arith.constant 0 : i32
    return %c0_i32, %arg0, %c0_i32_0 : i32, i32, i32
  }
  func.func @transform_1(%arg0: i32) -> (i32, i32) {
    %c0_i32 = arith.constant 0 : i32
    %c0_i32_0 = arith.constant 0 : i32
    return %arg0, %c0_i32 : i32, i32
  }
  func.func @transform_2(%arg0: i32) -> (i32, i32, i32) {
    %c0_i32 = arith.constant 0 : i32
    %c0_i32_0 = arith.constant 0 : i32
    %c0_i32_1 = arith.constant 0 : i32
    return %arg0, %c0_i32, %c0_i32_0 : i32, i32, i32
  }
}

</mosaic_0001>

<llo_original>
// kernel: tpu_custom_call.1
$region0: #{tpu_custom_call.1}
  #allocation0 [shape = 'u32[]', space=smem, size = 0x4, offset = 0x4, fixed_abs, tag = 'smem constant byte address 0x4 - core index']
  #allocation1 [shape = 'u32[144,128]{1,0:T(1,128)}', space=vmem, size = 0x12000, scoped, tag = 'internal scratch']
  %s0 = inlined_call_operand.hbm [shape: f32[2,8,128], index: 0, kind: input, shape index: {}]
  %s1 = inlined_call_operand.hbm [shape: f32[8,128], index: 1, kind: input, shape index: {}]
  %s2 = inlined_call_operand.hbm [shape: f32[1,1,1], index: 2, kind: output, shape index: {}]
  %s3 = sld [smem:[#allocation0]]
  $region26: #{tpu_custom_call.1} parent=0
    _
  %s5 = ssub.s32 1, %s3
  %s6 = scalar_select 0, %s5, %s3
  $region1: #{tpu_custom_call.1} parent=0
    #allocation2 [shape = 'u8[8192]{0}', space=vmem, size = 0x2000, scoped, tag = 'input window, operand 0, single buffered']
    #allocation3 [shape = 's32[1]{0}', space=sflag, size = 0x4, scoped, tag = 'scoped memory for tpu_custom_call.1']
    #allocation4 [shape = 's32[1]{0}', space=sflag, size = 0x4, scoped, tag = 'scoped memory for tpu_custom_call.1']
    #allocation5 [shape = 'u8[4096]{0}', space=vmem, size = 0x1000, scoped, tag = 'input window, operand 1, single buffered']
    #allocation6 [shape = 's32[1]{0}', space=sflag, size = 0x4, scoped, tag = 'scoped memory for tpu_custom_call.1']
    #allocation7 [shape = 'u8[512]{0}', space=vmem, size = 0x400, scoped, tag = 'output window, operand 0, single buffered']
    %7 = vsyncpa [#allocation3], 0
    %8 = vsyncpa [#allocation6], 0
    %9 = vsyncpa [#allocation4], 0
    // Predicated region
    $region2: #{tpu_custom_call.1} parent=1 // pred_check
      _
    $region3: #{tpu_custom_call.1} parent=1 // pred_check_branch
      %11 = sbr.rel (0) target = $region5
    $region4: #{tpu_custom_call.1} parent=1 // pred_region
      %s13 = ssub.s32 256, 256
      %14 = vsyncadd [#allocation3], %s13
      %s15 = sshll.u32 [#allocation2], 4
      %s16 = int_to_ptr.vmem [resolvable:$true] %s15
      %21 = dma.hbm_to_vmem [thread:$0]  %s0, 256, %s16, [#allocation3], 128, 128, 8
    $region5: #{tpu_custom_call.1} parent=1 // pred_fallthru
      _
    // Predicated region
    $region6: #{tpu_custom_call.1} parent=1 // pred_check
      _
    $region7: #{tpu_custom_call.1} parent=1 // pred_check_branch
      %23 = sbr.rel (0) target = $region9
    $region8: #{tpu_custom_call.1} parent=1 // pred_region
      %s25 = ssub.s32 128, 128
      %26 = vsyncadd [#allocation6], %s25
      %s28 = sshll.u32 [#allocation5], 4
      %s29 = int_to_ptr.vmem [resolvable:$true] %s28
      %31 = dma.hbm_to_vmem [thread:$0]  %s1, 128, %s29, [#allocation6]
    $region9: #{tpu_custom_call.1} parent=1 // pred_fallthru
      _
    // Predicated region
    $region10: #{tpu_custom_call.1} parent=1 // pred_check
      _
    $region11: #{tpu_custom_call.1} parent=1 // pred_check_branch
      %33 = sbr.rel (0) target = $region13
    $region12: #{tpu_custom_call.1} parent=1 // pred_region
      %34 = dma.done [#allocation3], 256
    $region13: #{tpu_custom_call.1} parent=1 // pred_fallthru
      _
    // Predicated region
    $region14: #{tpu_custom_call.1} parent=1 // pred_check
      _
    $region15: #{tpu_custom_call.1} parent=1 // pred_check_branch
      %36 = sbr.rel (0) target = $region17
    $region16: #{tpu_custom_call.1} parent=1 // pred_region
      %37 = dma.done [#allocation6], 128
    $region17: #{tpu_custom_call.1} parent=1 // pred_fallthru
      _
    %v38 = vld [vmem:[#allocation2] sm:$0xff]
    %v39 = vld [vmem:[#allocation2 + $0x8] sm:$0xff]
    %v40 = vld [vmem:[#allocation5] sm:$0xff]
    %v41 = vsub.f32 %v38, %v40
    %v42 = vsub.f32 %v39, %v40
    %v43 = vmul.f32 %v41, %v41
    %v44 = vmul.f32 %v42, %v42
    %v45 = vadd.f32 %v43, %v44
    %46 = vadd.xlane.f32.xlu0 %v45
    %v47 = vpop.xlane.xlu0 %46
    %v48 = vrot.slane %v47, 4
    %v49 = vadd.f32 %v47, %v48
    %v50 = vrot.slane %v49, 2
    %v51 = vadd.f32 %v49, %v50
    %v52 = vrot.slane %v51, 1
    %v53 = vadd.f32 %v51, %v52
    %s54 = vtos %v53
    %v55 = vstv %s54
    %vm56 = vcmask 0
    %57 = vst.msk [vmem:[#allocation7] sm:$0x1] %vm56, %v55
    // Predicated region
    $region18: #{tpu_custom_call.1} parent=1 // pred_check
      _
    $region19: #{tpu_custom_call.1} parent=1 // pred_check_branch
      %59 = sbr.rel (0) target = $region21
    $region20: #{tpu_custom_call.1} parent=1 // pred_region
      %s61 = ssub.s32 16, 16
      %62 = vsyncadd [#allocation4], %s61
      %s64 = sshll.u32 [#allocation7], 4
      %s65 = int_to_ptr.vmem [resolvable:$true] %s64
      %67 = dma.vmem_to_hbm [thread:$0]  %s65, 16, %s2, [#allocation4]
    $region21: #{tpu_custom_call.1} parent=1 // pred_fallthru
      _
    // Predicated region
    $region22: #{tpu_custom_call.1} parent=1 // pred_check
      _
    $region23: #{tpu_custom_call.1} parent=1 // pred_check_branch
      %69 = sbr.rel (0) target = $region25
    $region24: #{tpu_custom_call.1} parent=1 // pred_region
      %70 = dma.done [#allocation4], 16
    $region25: #{tpu_custom_call.1} parent=1 // pred_fallthru
      _
    %71 = vsyncpa [#allocation3], 1
    %72 = vsyncpa [#allocation6], 1
    %73 = vsyncpa [#allocation4], 1

</llo_original>
